<compile_context>
chip_gen: v7x
topology: tpu7x:2x2x1
jax: 0.10.0
libtpu: 0.0.40
codegen_flags: <defaults>
</compile_context>

<pallas_src>
import functools

import jax
import jax.numpy as jnp
from jax.experimental import pallas as pl
from jax.experimental.pallas import tpu as pltpu


def _round_up(x, m):
    return (x + m - 1) // m * m


def _emb_kernel(x_ref, w_ref, pos_ref, gamma_ref, beta_ref, o_ref, *, d_logical):
    # x_ref:    (ts, x_dim)    bf16   (leading batch dim squeezed away)
    # w_ref:    (x_dim, d_pad) bf16
    # pos_ref:  (ts, d_pad)    f32
    # gamma/beta: (1, d_pad)   f32
    # o_ref:    (ts, d_pad)    f32
    x = x_ref[...]
    w = w_ref[...]

    # Linear (no bias) on the MXU: bf16 inputs, f32 accumulation.
    y = jnp.dot(x, w, preferred_element_type=jnp.float32) + pos_ref[...]

    # LayerNorm over the logical d_model (padded columns of y are exactly 0,
    # so plain sums over the padded axis equal sums over the logical axis).
    inv_d = 1.0 / d_logical
    s = jnp.sum(y, axis=-1, keepdims=True)
    s2 = jnp.sum(y * y, axis=-1, keepdims=True)
    mean = s * inv_d
    var = s2 * inv_d - mean * mean
    inv = jax.lax.rsqrt(var + 1e-5)            # eps matches nn.LayerNorm default

    out = (y - mean) * inv * gamma_ref[...] + beta_ref[...]
    o_ref[...] = out.astype(o_ref.dtype)


def transformer_embeddings(x, w_t, pos_emb, gamma, beta):
    """x: (B, S, x_dim) f32; w_t: (x_dim, d_model) (transpose of torch Linear
    weight); pos_emb: (S, d_model); gamma, beta: (d_model,).
    Returns (B, S, d_model) f32."""
    B, S, x_dim = x.shape
    d_model = w_t.shape[1]
    assert pos_emb.shape == (S, d_model), "input_seq_len must equal max_seq_len"

    # ---- padding / tiling decisions -------------------------------------
    d_pad = _round_up(d_model, 128)                 # lane-dense output
    ts = 256 if S >= 256 else _round_up(S, 8)       # sequence tile (rows)
    s_pad = _round_up(S, ts)

    # ---- dtype + padding of operands ------------------------------------
    x_b = x.astype(jnp.bfloat16)
    w_b = w_t.astype(jnp.bfloat16)
    pos_p = pos_emb.astype(jnp.float32)
    gamma_p = gamma.astype(jnp.float32)
    beta_p = beta.astype(jnp.float32)

    if s_pad != S:
        x_b = jnp.pad(x_b, ((0, 0), (0, s_pad - S), (0, 0)))
        pos_p = jnp.pad(pos_p, ((0, s_pad - S), (0, 0)))
    if d_pad != d_model:
        w_b = jnp.pad(w_b, ((0, 0), (0, d_pad - d_model)))
        pos_p = jnp.pad(pos_p, ((0, 0), (0, d_pad - d_model)))
        gamma_p = jnp.pad(gamma_p, (0, d_pad - d_model))
        beta_p = jnp.pad(beta_p, (0, d_pad - d_model))

    gamma2 = gamma_p.reshape(1, d_pad)
    beta2 = beta_p.reshape(1, d_pad)

    grid = (B, s_pad // ts)

    # ---- VMEM budget (double-buffered tiles + resident weight) ----------
    tile_bytes = (
        2 * ts * x_dim * 2        # x tile, bf16, double-buffered
        + 2 * ts * d_pad * 4      # pos tile, f32, double-buffered
        + 2 * ts * d_pad * 4      # out tile, f32, double-buffered
        + 2 * x_dim * d_pad * 2   # weight (double-buffered, same block)
        + 4 * d_pad * 4           # gamma/beta
    )
    vmem_limit = int(min(100 * 2**20, max(32 * 2**20, 3 * tile_bytes)))

    cost = pl.CostEstimate(
        flops=2 * B * S * x_dim * d_model,
        transcendentals=0,
        bytes_accessed=(
            B * s_pad * x_dim * 2            # x (bf16)
            + x_dim * d_pad * 2              # W (bf16)
            + B * s_pad * d_pad * 4          # pos (re-read per batch)
            + B * s_pad * d_pad * 4          # out
        ),
    )

    kernel = functools.partial(_emb_kernel, d_logical=float(d_model))

    out = pl.pallas_call(
        kernel,
        out_shape=jax.ShapeDtypeStruct((B, s_pad, d_pad), jnp.float32),
        grid_spec=pltpu.PrefetchScalarGridSpec(
            num_scalar_prefetch=0,
            grid=grid,
            in_specs=[
                pl.BlockSpec((pl.Squeezed(), ts, x_dim), lambda b, s: (b, s, 0)),
                pl.BlockSpec((x_dim, d_pad), lambda b, s: (0, 0)),
                pl.BlockSpec((ts, d_pad), lambda b, s: (s, 0)),
                pl.BlockSpec((1, d_pad), lambda b, s: (0, 0)),
                pl.BlockSpec((1, d_pad), lambda b, s: (0, 0)),
            ],
            out_specs=pl.BlockSpec(
                (pl.Squeezed(), ts, d_pad), lambda b, s: (b, s, 0)
            ),
        ),
        compiler_params=pltpu.CompilerParams(
            dimension_semantics=("parallel", "parallel"),
            vmem_limit_bytes=vmem_limit,
        ),
        cost_estimate=cost,
    )(x_b, w_b, pos_p, gamma2, beta2)

    if s_pad != S or d_pad != d_model:
        out = out[:, :S, :d_model]
    return out


def _reference(x, w_t, pos_emb, gamma, beta):
    # Same bf16-input / f32-accumulation matmul as the kernel; LayerNorm in f32.
    y = jnp.einsum(
        "bsi,id->bsd",
        x.astype(jnp.bfloat16),
        w_t.astype(jnp.bfloat16),
        preferred_element_type=jnp.float32,
    ) + pos_emb[None]
    mean = jnp.mean(y, axis=-1, keepdims=True)
    var = jnp.mean((y - mean) ** 2, axis=-1, keepdims=True)
    normed = (y - mean) / jnp.sqrt(var + 1e-5)
    return normed * gamma + beta


if __name__ == "__main__":
    # Small shapes consistent with the module (max_seq_len == S):
    B, S, x_dim, d_model = 2, 8, 16, 32

    key = jax.random.PRNGKey(0)
    k_x, k_w, k_pos = jax.random.split(key, 3)

    x = jax.random.normal(k_x, (B, S, x_dim), dtype=jnp.float32)
    # PyTorch Linear weight is (d_model, x_dim); we store its transpose.
    w_t = jax.random.normal(k_w, (x_dim, d_model), dtype=jnp.float32) * 0.1
    pos_emb = jax.random.normal(k_pos, (S, d_model), dtype=jnp.float32)
    gamma = jnp.ones((d_model,), dtype=jnp.float32)   # nn.LayerNorm init
    beta = jnp.zeros((d_model,), dtype=jnp.float32)

    out = transformer_embeddings(x, w_t, pos_emb, gamma, beta)
    out = jax.block_until_ready(out)

    ref = _reference(x, w_t, pos_emb, gamma, beta)
    assert out.shape == (B, S, d_model)
    assert jnp.allclose(out, ref, atol=2e-3, rtol=2e-3), "mismatch vs reference"

    print("KERNEL_OK")
</pallas_src>

<mosaic_0001>
module attributes {stable_mosaic.version = 11 : i64} {
  func.func @_emb_kernel(%arg0: i32, %arg1: i32, %arg2: memref<1x8x16xbf16, #tpu.memory_space<vmem>>, %arg3: memref<16x128xbf16, #tpu.memory_space<vmem>>, %arg4: memref<8x128xf32, #tpu.memory_space<vmem>>, %arg5: memref<1x128xf32, #tpu.memory_space<vmem>>, %arg6: memref<1x128xf32, #tpu.memory_space<vmem>>, %arg7: memref<1x8x128xf32, #tpu.memory_space<vmem>>) attributes {dimension_semantics = [#tpu.dimension_semantics<parallel>, #tpu.dimension_semantics<parallel>], iteration_bounds = array<i64: 2, 1>, scalar_prefetch = 0 : i64, scratch_operands = 0 : i64, tpu.core_type = #tpu.core_type<tc>, window_params = [{transform_indices = @transform_0, window_bounds = array<i64: 1, 8, 16>}, {pipeline_mode = #tpu.pipeline_mode<synchronous>, transform_indices = @transform_1, window_bounds = array<i64: 16, 128>}, {transform_indices = @transform_2, window_bounds = array<i64: 8, 128>}, {pipeline_mode = #tpu.pipeline_mode<synchronous>, transform_indices = @transform_3, window_bounds = array<i64: 1, 128>}, {pipeline_mode = #tpu.pipeline_mode<synchronous>, transform_indices = @transform_4, window_bounds = array<i64: 1, 128>}, {transform_indices = @transform_5, window_bounds = array<i64: 1, 8, 128>}]} {
    %c0 = arith.constant 0 : index
    %c0_0 = arith.constant 0 : index
    %c0_1 = arith.constant 0 : index
    %0 = vector.load %arg2[%c0, %c0_0, %c0_1] : memref<1x8x16xbf16, #tpu.memory_space<vmem>>, vector<1x8x16xbf16>
    %1 = vector.shape_cast %0 : vector<1x8x16xbf16> to vector<8x16xbf16>
    %c0_2 = arith.constant 0 : index
    %c0_3 = arith.constant 0 : index
    %2 = vector.load %arg3[%c0_2, %c0_3] : memref<16x128xbf16, #tpu.memory_space<vmem>>, vector<16x128xbf16>
    %cst = arith.constant dense<0.000000e+00> : vector<8x128xf32>
    %3 = tpu.matmul %1, %2, %cst {dimension_numbers = #tpu.dot_dimension_numbers<[1], [0], [0], [1], [0, 0, 1, 1], [], []>} : vector<8x16xbf16>, vector<16x128xbf16>, vector<8x128xf32> -> vector<8x128xf32>
    %c0_4 = arith.constant 0 : index
    %c0_5 = arith.constant 0 : index
    %4 = vector.load %arg4[%c0_4, %c0_5] : memref<8x128xf32, #tpu.memory_space<vmem>>, vector<8x128xf32>
    %5 = arith.addf %3, %4 : vector<8x128xf32>
    %cst_6 = arith.constant dense<0.000000e+00> : vector<8xf32>
    %6 = vector.multi_reduction <add>, %5, %cst_6 [1] : vector<8x128xf32> to vector<8xf32>
    %7 = vector.shape_cast %6 : vector<8xf32> to vector<8x1xf32>
    %8 = arith.mulf %5, %5 : vector<8x128xf32>
    %cst_7 = arith.constant dense<0.000000e+00> : vector<8xf32>
    %9 = vector.multi_reduction <add>, %8, %cst_7 [1] : vector<8x128xf32> to vector<8xf32>
    %10 = vector.shape_cast %9 : vector<8xf32> to vector<8x1xf32>
    %cst_8 = arith.constant 3.125000e-02 : f32
    %11 = vector.broadcast %cst_8 : f32 to vector<8x1xf32>
    %12 = arith.mulf %7, %11 : vector<8x1xf32>
    %cst_9 = arith.constant 3.125000e-02 : f32
    %13 = vector.broadcast %cst_9 : f32 to vector<8x1xf32>
    %14 = arith.mulf %10, %13 : vector<8x1xf32>
    %15 = arith.mulf %12, %12 : vector<8x1xf32>
    %16 = arith.subf %14, %15 : vector<8x1xf32>
    %cst_10 = arith.constant 9.99999974E-6 : f32
    %17 = vector.broadcast %cst_10 : f32 to vector<8x1xf32>
    %18 = arith.addf %16, %17 : vector<8x1xf32>
    %19 = math.rsqrt %18 : vector<8x1xf32>
    %20 = vector.broadcast %12 : vector<8x1xf32> to vector<8x128xf32>
    %21 = arith.subf %5, %20 : vector<8x128xf32>
    %22 = vector.broadcast %19 : vector<8x1xf32> to vector<8x128xf32>
    %23 = arith.mulf %21, %22 : vector<8x128xf32>
    %c0_11 = arith.constant 0 : index
    %c0_12 = arith.constant 0 : index
    %24 = vector.load %arg5[%c0_11, %c0_12] : memref<1x128xf32, #tpu.memory_space<vmem>>, vector<1x128xf32>
    %25 = vector.broadcast %24 : vector<1x128xf32> to vector<8x128xf32>
    %26 = arith.mulf %23, %25 : vector<8x128xf32>
    %c0_13 = arith.constant 0 : index
    %c0_14 = arith.constant 0 : index
    %27 = vector.load %arg6[%c0_13, %c0_14] : memref<1x128xf32, #tpu.memory_space<vmem>>, vector<1x128xf32>
    %28 = vector.broadcast %27 : vector<1x128xf32> to vector<8x128xf32>
    %29 = arith.addf %26, %28 : vector<8x128xf32>
    %c0_15 = arith.constant 0 : index
    %c0_16 = arith.constant 0 : index
    %c0_17 = arith.constant 0 : index
    %30 = vector.load %arg7[%c0_15, %c0_16, %c0_17] : memref<1x8x128xf32, #tpu.memory_space<vmem>>, vector<1x8x128xf32>
    %31 = vector.shape_cast %30 : vector<1x8x128xf32> to vector<8x128xf32>
    %32 = vector.shape_cast %29 : vector<8x128xf32> to vector<1x8x128xf32>
    tpu.vector_store %arg7[%c0_15, %c0_16, %c0_17], %32 {strides = array<i32>} : memref<1x8x128xf32, #tpu.memory_space<vmem>>, vector<1x8x128xf32>,
    return
  }
  func.func @transform_0(%arg0: i32, %arg1: i32) -> (i32, i32, i32) {
    %c0_i32 = arith.constant 0 : i32
    %c0_i32_0 = arith.constant 0 : i32
    return %arg0, %arg1, %c0_i32 : i32, i32, i32
  }
  func.func @transform_1(%arg0: i32, %arg1: i32) -> (i32, i32) {
    %c0_i32 = arith.constant 0 : i32
    %c0_i32_0 = arith.constant 0 : i32
    %c0_i32_1 = arith.constant 0 : i32
    return %c0_i32, %c0_i32_0 : i32, i32
  }
  func.func @transform_2(%arg0: i32, %arg1: i32) -> (i32, i32) {
    %c0_i32 = arith.constant 0 : i32
    %c0_i32_0 = arith.constant 0 : i32
    return %arg1, %c0_i32 : i32, i32
  }
  func.func @transform_3(%arg0: i32, %arg1: i32) -> (i32, i32) {
    %c0_i32 = arith.constant 0 : i32
    %c0_i32_0 = arith.constant 0 : i32
    %c0_i32_1 = arith.constant 0 : i32
    return %c0_i32, %c0_i32_0 : i32, i32
  }
  func.func @transform_4(%arg0: i32, %arg1: i32) -> (i32, i32) {
    %c0_i32 = arith.constant 0 : i32
    %c0_i32_0 = arith.constant 0 : i32
    %c0_i32_1 = arith.constant 0 : i32
    return %c0_i32, %c0_i32_0 : i32, i32
  }
  func.func @transform_5(%arg0: i32, %arg1: i32) -> (i32, i32, i32) {
    %c0_i32 = arith.constant 0 : i32
    %c0_i32_0 = arith.constant 0 : i32
    return %arg0, %arg1, %c0_i32 : i32, i32, i32
  }
}

</mosaic_0001>

<llo_original>
// kernel: tpu_custom_call.1
$region0: #{tpu_custom_call.1}
  #allocation0 [shape = 'u32[]', space=smem, size = 0x4, offset = 0x4, fixed_abs, tag = 'smem constant byte address 0x4 - core index']
  #allocation1 [shape = 'u32[144,128]{1,0:T(1,128)}', space=vmem, size = 0x12000, scoped, tag = 'internal scratch']
  %s0 = inlined_call_operand.hbm [shape: bf16[2,8,16], index: 0, kind: input, shape index: {}]
  %s1 = inlined_call_operand.hbm [shape: bf16[16,128], index: 1, kind: input, shape index: {}]
  %s2 = inlined_call_operand.hbm [shape: f32[8,128], index: 2, kind: input, shape index: {}]
  %s3 = inlined_call_operand.vmem [shape: f32[1,128], index: 3, kind: input, shape index: {}]
  %s4 = inlined_call_operand.vmem [shape: f32[1,128], index: 4, kind: input, shape index: {}]
  %s5 = inlined_call_operand.hbm [shape: f32[2,8,128], index: 5, kind: output, shape index: {}]
  %s6 = sld [smem:[#allocation0]]
  $region65: #{tpu_custom_call.1} parent=0
    _
  %s8 = ssub.s32 1, %s6
  %s9 = scalar_select 0, %s8, %s6
  $region1: #{tpu_custom_call.1} parent=0
    #allocation2 [shape = 'u8[4096]{0}', space=vmem, size = 0x1000, scoped, tag = 'input window, operand 0']
    #allocation3 [shape = 's32[2]{0}', space=sflag, size = 0x8, scoped, tag = 'scoped memory for tpu_custom_call.1']
    #allocation4 [shape = 's32[2]{0}', space=sflag, size = 0x8, scoped, tag = 'scoped memory for tpu_custom_call.1']
    #allocation5 [shape = 'u8[4096]{0}', space=vmem, size = 0x1000, scoped, tag = 'input window, operand 1, single buffered']
    #allocation6 [shape = 's32[1]{0}', space=sflag, size = 0x4, scoped, tag = 'scoped memory for tpu_custom_call.1']
    #allocation7 [shape = 'u8[4096]{0}', space=vmem, size = 0x1000, scoped, tag = 'input window, operand 2, single buffered']
    #allocation8 [shape = 'u8[8192]{0}', space=vmem, size = 0x2000, scoped, tag = 'output window, operand 0']
    %10 = vsyncpa [#allocation3], 0
    %s11 = scalar_lea.sflag [#allocation3], 1
    %12 = vsyncpa %s11, 0
    %13 = vsyncpa [#allocation6], 0
    %14 = vsyncpa [#allocation4], 0
    %s15 = scalar_lea.sflag [#allocation4], 1
    %16 = vsyncpa %s15, 0
    loop: start=0, step=1, limit=4
    $region2: #{tpu_custom_call.1} parent=1 // loop_pre_header
      _
    $region3: #{tpu_custom_call.1} parent=1 // loop_header
      %s18 = sphi 0, %s22
      %p19 = scmp.ge.s32.totalorder %s18, 4
      %s25 = sphi 0, %s37
      %s26 = sphi 0, %s33
      %s27 = sphi 0, %s25
      %s28 = sphi 0, %s26
      %s29 = sphi 0, %s27
      %s30 = sphi 0, %s28
      %s42 = sphi 0, %s44
      %s45 = sphi 0, %s42
      %s46 = sphi 0, %s45
      %s62 = sphi 0, %s46
      %s66 = sphi 0, %s66
      %s68 = sphi 0, %s66
      %s69 = sphi 0, %s68
      %s83 = sphi 0, %s69
      %s89 = sphi 0, %s91
      %s92 = sphi 0, %s89
      %s93 = sphi 0, %s92
      %s109 = sphi 0, %s93
      %s113 = sphi 0, %s113
      %s115 = sphi 0, %s113
      %s116 = sphi 0, %s115
      %s130 = sphi 0, %s116
      %s134 = sphi 0, %s134
      %s136 = sphi 0, %s134
      %s137 = sphi 0, %s136
      %s151 = sphi 0, %s137
      %s159 = sphi 0, %s161
      %s162 = sphi 0, %s159
      %s163 = sphi 0, %s162
      %s179 = sphi 0, %s163
    $region4: #{tpu_custom_call.1} parent=1 // loop_header_branch
      %21 = sbr.rel (%p19) target = $region8
    $region5: #{tpu_custom_call.1} parent=1 // loop_body
      %s23 = ssub.s32 %s18, 1
      %s24 = ssub.s32 %s18, 2
      %s31 = sadd.s32 1, %s26
      %p32 = scmp.ge.s32.totalorder %s31, 1
      %s33 = scalar_select %p32, 0, %s31
      %s34 = sadd.s32 1, %s25
      %s35 = scalar_select %p32, %s34, %s25
      %p36 = scmp.ge.s32.totalorder %s35, 2
      %s37 = scalar_select %p36, 0, %s35
      %s38 = ssub.s32 %s25, %s37
      %s39 = ssub.s32 %s26, %s33
      %s40 = sor.u32 %s38, %s39
      %p41 = scmp.eq.s32.totalorder %s40, 0
      %s43 = sadd.s32 %s42, 1
      %s44 = scalar_select %p41, %s42, %s43
      %p47 = pneg %p41
      %p48 = scmp.eq.s32.totalorder %s18, 1
      %p49 = por %p47, %p48
      %p50 = scmp.ne.s32.totalorder %s42, %s45
      %p51 = scmp.eq.s32.totalorder %s18, 0
      %p52 = por %p50, %p51
      %p53 = scmp.ne.s32.totalorder %s42, %s45
      %p54 = scmp.eq.s32.totalorder %s23, 1
      %p55 = por %p53, %p54
      %p56 = scmp.ne.s32.totalorder %s45, %s46
      %p57 = scmp.eq.s32.totalorder %s23, 0
      %p58 = por %p56, %p57
      %p59 = scmp.ne.s32.totalorder %s45, %s46
      %p60 = scmp.eq.s32.totalorder %s24, 1
      %p61 = por %p59, %p60
      %p63 = scmp.ne.s32.totalorder %s46, %s62
      %p64 = scmp.eq.s32.totalorder %s24, 0
      %p65 = por %p63, %p64
      %s67 = sadd.s32 %s66, 1
      %p70 = scmp.eq.s32.totalorder %s18, 1
      %p71 = scmp.ne.s32.totalorder %s66, %s68
      %p72 = scmp.eq.s32.totalorder %s18, 0
      %p73 = por %p71, %p72
      %p74 = scmp.ne.s32.totalorder %s66, %s68
      %p75 = scmp.eq.s32.totalorder %s23, 1
      %p76 = por %p74, %p75
      %p77 = scmp.ne.s32.totalorder %s68, %s69
      %p78 = scmp.eq.s32.totalorder %s23, 0
      %p79 = por %p77, %p78
      %p80 = scmp.ne.s32.totalorder %s68, %s69
      %p81 = scmp.eq.s32.totalorder %s24, 1
      %p82 = por %p80, %p81
      %p84 = scmp.ne.s32.totalorder %s69, %s83
      %p85 = scmp.eq.s32.totalorder %s24, 0
      %p86 = por %p84, %p85
      %s87 = ssub.s32 %s26, %s33
      %p88 = scmp.eq.s32.totalorder %s87, 0
      %s90 = sadd.s32 %s89, 1
      %s91 = scalar_select %p88, %s89, %s90
      %p94 = pneg %p88
      %p95 = scmp.eq.s32.totalorder %s18, 1
      %p96 = por %p94, %p95
      %p97 = scmp.ne.s32.totalorder %s89, %s92
      %p98 = scmp.eq.s32.totalorder %s18, 0
      %p99 = por %p97, %p98
      %p100 = scmp.ne.s32.totalorder %s89, %s92
      %p101 = scmp.eq.s32.totalorder %s23, 1
      %p102 = por %p100, %p101
      %p103 = scmp.ne.s32.totalorder %s92, %s93
      %p104 = scmp.eq.s32.totalorder %s23, 0
      %p105 = por %p103, %p104
      %p106 = scmp.ne.s32.totalorder %s92, %s93
      %p107 = scmp.eq.s32.totalorder %s24, 1
      %p108 = por %p106, %p107
      %p110 = scmp.ne.s32.totalorder %s93, %s109
      %p111 = scmp.eq.s32.totalorder %s24, 0
      %p112 = por %p110, %p111
      %s114 = sadd.s32 %s113, 1
      %p117 = scmp.eq.s32.totalorder %s18, 1
      %p118 = scmp.ne.s32.totalorder %s113, %s115
      %p119 = scmp.eq.s32.totalorder %s18, 0
      %p120 = por %p118, %p119
      %p121 = scmp.ne.s32.totalorder %s113, %s115
      %p122 = scmp.eq.s32.totalorder %s23, 1
      %p123 = por %p121, %p122
      %p124 = scmp.ne.s32.totalorder %s115, %s116
      %p125 = scmp.eq.s32.totalorder %s23, 0
      %p126 = por %p124, %p125
      %p127 = scmp.ne.s32.totalorder %s115, %s116
      %p128 = scmp.eq.s32.totalorder %s24, 1
      %p129 = por %p127, %p128
      %p131 = scmp.ne.s32.totalorder %s116, %s130
      %p132 = scmp.eq.s32.totalorder %s24, 0
      %p133 = por %p131, %p132
      %s135 = sadd.s32 %s134, 1
      %p138 = scmp.eq.s32.totalorder %s18, 1
      %p139 = scmp.ne.s32.totalorder %s134, %s136
      %p140 = scmp.eq.s32.totalorder %s18, 0
      %p141 = por %p139, %p140
      %p142 = scmp.ne.s32.totalorder %s134, %s136
      %p143 = scmp.eq.s32.totalorder %s23, 1
      %p144 = por %p142, %p143
      %p145 = scmp.ne.s32.totalorder %s136, %s137
      %p146 = scmp.eq.s32.totalorder %s23, 0
      %p147 = por %p145, %p146
      %p148 = scmp.ne.s32.totalorder %s136, %s137
      %p149 = scmp.eq.s32.totalorder %s24, 1
      %p150 = por %p148, %p149
      %p152 = scmp.ne.s32.totalorder %s137, %s151
      %p153 = scmp.eq.s32.totalorder %s24, 0
      %p154 = por %p152, %p153
      %s155 = ssub.s32 %s25, %s37
      %s156 = ssub.s32 %s26, %s33
      %s157 = sor.u32 %s155, %s156
      %p158 = scmp.eq.s32.totalorder %s157, 0
      %s160 = sadd.s32 %s159, 1
      %s161 = scalar_select %p158, %s159, %s160
      %p164 = pneg %p158
      %p165 = scmp.eq.s32.totalorder %s18, 1
      %p166 = por %p164, %p165
      %p167 = scmp.ne.s32.totalorder %s159, %s162
      %p168 = scmp.eq.s32.totalorder %s18, 0
      %p169 = por %p167, %p168
      %p170 = scmp.ne.s32.totalorder %s159, %s162
      %p171 = scmp.eq.s32.totalorder %s23, 1
      %p172 = por %p170, %p171
      %p173 = scmp.ne.s32.totalorder %s162, %s163
      %p174 = scmp.eq.s32.totalorder %s23, 0
      %p175 = por %p173, %p174
      %p176 = scmp.ne.s32.totalorder %s162, %s163
      %p177 = scmp.eq.s32.totalorder %s24, 1
      %p178 = por %p176, %p177
      %p180 = scmp.ne.s32.totalorder %s163, %s179
      %p181 = scmp.eq.s32.totalorder %s24, 0
      %p182 = por %p180, %p181
      %p183 = scmp.le.s32.totalorder 1, %s18
      %p184 = scmp.lt.s32.totalorder %s18, 3
      %p185 = pnand %p183, %p184
      %p186 = pneg %p185
      // Predicated region
      $region9: #{tpu_custom_call.1} parent=5 // pred_check
        _
      $region10: #{tpu_custom_call.1} parent=5 // pred_check_branch
        %188 = sbr.rel (%p185) target = $region12
      $region11: #{tpu_custom_call.1} parent=5 // pred_region
        %s189 = ssub.s32 %s18, 1
        // Predicated region
        $region13: #{tpu_custom_call.1} parent=11 // pred_check
          %p190 = pneg %p79
        $region14: #{tpu_custom_call.1} parent=11 // pred_check_branch
          %192 = sbr.rel (%p190) target = $region16
        $region15: #{tpu_custom_call.1} parent=11 // pred_region
          %s194 = ssub.s32 128, 128
          %195 = vsyncadd [#allocation6], %s194
          %s196 = sshll.u32 [#allocation5], 4
          %s197 = int_to_ptr.vmem [resolvable:$true] %s196
          %202 = dma.hbm_to_vmem [thread:$0]  %s1, 128, %s197, [#allocation6], 64, 64, 4
        $region16: #{tpu_custom_call.1} parent=11 // pred_fallthru
          _
        // Predicated region
        $region17: #{tpu_custom_call.1} parent=11 // pred_check
          %p203 = pneg %p105
        $region18: #{tpu_custom_call.1} parent=11 // pred_check_branch
          %205 = sbr.rel (%p203) target = $region20
        $region19: #{tpu_custom_call.1} parent=11 // pred_region
          %s207 = ssub.s32 128, 128
          %208 = vsyncadd [#allocation6], %s207
          %s209 = smul.addr %s28, 128
          %s210 = scalar_lea.hbm %s2, %s209
          %s212 = sshll.u32 [#allocation7], 4
          %s213 = int_to_ptr.vmem [resolvable:$true] %s212
          %215 = dma.hbm_to_vmem [thread:$0]  %s210, 128, %s213, [#allocation6]
        $region20: #{tpu_custom_call.1} parent=11 // pred_fallthru
          _
        // Predicated region
        $region21: #{tpu_custom_call.1} parent=11 // pred_check
          %p216 = pneg %p126
        $region22: #{tpu_custom_call.1} parent=11 // pred_check_branch
          %218 = sbr.rel (%p216) target = $region24
        $region23: #{tpu_custom_call.1} parent=11 // pred_region
          _
        $region24: #{tpu_custom_call.1} parent=11 // pred_fallthru
          _
        // Predicated region
        $region25: #{tpu_custom_call.1} parent=11 // pred_check
          %p219 = pneg %p147
        $region26: #{tpu_custom_call.1} parent=11 // pred_check_branch
          %221 = sbr.rel (%p219) target = $region28
        $region27: #{tpu_custom_call.1} parent=11 // pred_region
          _
        $region28: #{tpu_custom_call.1} parent=11 // pred_fallthru
          _
      $region12: #{tpu_custom_call.1} parent=5 // pred_fallthru
        _
      %p222 = scmp.lt.s32.totalorder %s18, 2
      // Predicated region
      $region29: #{tpu_custom_call.1} parent=5 // pred_check
        %p223 = pneg %p222
      $region30: #{tpu_custom_call.1} parent=5 // pred_check_branch
        %225 = sbr.rel (%p223) target = $region32
      $region31: #{tpu_custom_call.1} parent=5 // pred_region
        // Predicated region
        $region33: #{tpu_custom_call.1} parent=31 // pred_check
          %p226 = pneg %p52
        $region34: #{tpu_custom_call.1} parent=31 // pred_check_branch
          %228 = sbr.rel (%p226) target = $region36
        $region35: #{tpu_custom_call.1} parent=31 // pred_region
          %s229 = sand.u32 %s42, 1
          %s230 = scalar_lea.sflag [#allocation3], %s229
          %s231 = sand.u32 %s42, 1
          %s232 = smul.addr %s231, 4
          %s233 = scalar_lea.vmem [#allocation2], %s232
          %s235 = ssub.s32 64, 64
          %236 = vsyncadd %s230, %s235
          %s237 = sadd.s32 %s26, %s25
          %s238 = smul.addr %s237, 64
          %s239 = scalar_lea.hbm %s0, %s238
          %s241 = sshll.u32 %s233, 4
          %s242 = int_to_ptr.vmem [resolvable:$true] %s241
          %244 = dma.hbm_to_vmem [thread:$0]  %s239, 64, %s242, %s230
        $region36: #{tpu_custom_call.1} parent=31 // pred_fallthru
          _
      $region32: #{tpu_custom_call.1} parent=5 // pred_fallthru
        _
      %p245 = scmp.le.s32.totalorder 1, %s18
      %p246 = scmp.lt.s32.totalorder %s18, 3
      %p247 = pnand %p245, %p246
      %p248 = pneg %p247
      // Predicated region
      $region37: #{tpu_custom_call.1} parent=5 // pred_check
        _
      $region38: #{tpu_custom_call.1} parent=5 // pred_check_branch
        %250 = sbr.rel (%p247) target = $region40
      $region39: #{tpu_custom_call.1} parent=5 // pred_region
        %s251 = ssub.s32 %s18, 1
        %s252 = sand.u32 %s45, 1
        %s253 = scalar_lea.sflag [#allocation3], %s252
        %s254 = sand.u32 %s45, 1
        %s255 = smul.addr %s254, 4
        %s256 = scalar_lea.vmem [#allocation2], %s255
        // Predicated region
        $region41: #{tpu_custom_call.1} parent=39 // pred_check
          %p257 = pneg %p58
        $region42: #{tpu_custom_call.1} parent=39 // pred_check_branch
          %259 = sbr.rel (%p257) target = $region44
        $region43: #{tpu_custom_call.1} parent=39 // pred_region
          %260 = dma.done %s253, 64
        $region44: #{tpu_custom_call.1} parent=39 // pred_fallthru
          _
        // Predicated region
        $region45: #{tpu_custom_call.1} parent=39 // pred_check
          %p261 = pneg %p79
        $region46: #{tpu_custom_call.1} parent=39 // pred_check_branch
          %263 = sbr.rel (%p261) target = $region48
        $region47: #{tpu_custom_call.1} parent=39 // pred_region
          %264 = dma.done [#allocation6], 128
        $region48: #{tpu_custom_call.1} parent=39 // pred_fallthru
          _
        // Predicated region
        $region49: #{tpu_custom_call.1} parent=39 // pred_check
          %p265 = pneg %p105
        $region50: #{tpu_custom_call.1} parent=39 // pred_check_branch
          %267 = sbr.rel (%p265) target = $region52
        $region51: #{tpu_custom_call.1} parent=39 // pred_region
          %268 = dma.done [#allocation6], 128
        $region52: #{tpu_custom_call.1} parent=39 // pred_fallthru
          _
        %s269 = sand.u32 %s45, 1
        %s270 = scalar_lea.sflag [#allocation3], %s269
        %s271 = sand.u32 %s45, 1
        %s272 = smul.addr %s271, 4
        %s273 = scalar_lea.vmem [#allocation2], %s272
        %p274 = pneg %p58
        %p275 = pneg %p55
        %p276 = pneg %p79
        %p277 = pneg %p76
        %p278 = pneg %p105
        %p279 = pneg %p102
        %p280 = pneg %p126
        %p281 = pneg %p123
        %p282 = pneg %p147
        %p283 = pneg %p144
        %p284 = pneg %p175
        %p285 = pneg %p172
        %s286 = sand.u32 %s162, 1
        %s287 = scalar_lea.sflag [#allocation4], %s286
        %s288 = sand.u32 %s162, 1
        %s289 = smul.addr %s288, 8
        %s290 = scalar_lea.vmem [#allocation8], %s289
        %v292 = vld [vmem:[%s256] sm:$0xf]
        %v293 = vld [vmem:[#allocation5] sm:$0xf]
        %v294 = vld [vmem:[#allocation5 + $0x4] sm:$0xf]
        %v295 = vld [vmem:[#allocation7] sm:$0xff]
        %v298 = vunpack.c.l.b16 %v293
        %v299 = vunpack.c.l.b16 %v294
        %v300 = vpack.c.b16 %v299, %v298
        %vm302 = vcmask 130048
        %v304 = vsel %vm302, %v292, 0
        %306 = vmatprep.subr.bf16.mxu0 0
        %307 = vmatpush1.bf16.msra.mxu0 %v300
        %308 = vmatprep.subr.bf16.mxu0 0
        %309 = vmatpush1.bf16.msra.mxu0 0
        %310 = vmatprep.subr.bf16.mxu0 0
        %311 = vmatpush1.bf16.msra.mxu0 0
        %312 = vmatprep.subr.bf16.mxu0 0
        %313 = vmatpush1.bf16.msra.mxu0 0
        %314 = vmatprep.subr.bf16.mxu0 0
        %315 = vmatpush1.bf16.msra.mxu0 0
        %316 = vmatprep.subr.bf16.mxu0 0
        %317 = vmatpush1.bf16.msra.mxu0 0
        %318 = vmatprep.subr.bf16.mxu0 0
        %319 = vmatpush1.bf16.msra.mxu0 0
        %320 = vmatprep.subr.bf16.mxu0 0
        %321 = vmatpush1.bf16.msra.mxu0 0
        %322 = vmatprep.subr.bf16.mxu0 0
        %323 = vmatpush1.bf16.msra.mxu0 0
        %324 = vmatprep.subr.bf16.mxu0 0
        %325 = vmatpush1.bf16.msra.mxu0 0
        %326 = vmatprep.subr.bf16.mxu0 0
        %327 = vmatpush1.bf16.msra.mxu0 0
        %328 = vmatprep.subr.bf16.mxu0 0
        %329 = vmatpush1.bf16.msra.mxu0 0
        %330 = vmatprep.subr.bf16.mxu0 0
        %331 = vmatpush1.bf16.msra.mxu0 0
        %332 = vmatprep.subr.bf16.mxu0 0
        %333 = vmatpush1.bf16.msra.mxu0 0
        %334 = vmatprep.subr.bf16.mxu0 0
        %335 = vmatpush1.bf16.msra.mxu0 0
        %336 = vmatprep.subr.bf16.mxu0 0
        %337 = vmatpush1.bf16.msra.mxu0 0
        %338 = vmatprep.mubr.bf16.mxu0 0
        %339 = vmatmul.mubr.bf16.gmra.mrb[0].mxu0 %v304
        %v340 = vpop.f32.mrb[0].mxu0
        %v341 = vadd.f32 %v295, %v340
        %v342 = vpop.f32.mrb[0].mxu0
        %v343 = vpop.f32.mrb[0].mxu0
        %v344 = vpop.f32.mrb[0].mxu0
        %345 = vdwg.mxu0
        %346 = vadd.xlane.f32.xlu0 %v341
        %v347 = vpop.xlane.xlu0 %346
        %v348 = vmul.f32 %v341, %v341
        %349 = vadd.xlane.f32.xlu0 %v348
        %v350 = vpop.xlane.xlu0 %349
        %v351 = vmul.f32 %v347, 0.03125
        %v352 = vmul.f32 %v350, 0.03125
        %v353 = vmul.f32 %v351, %v351
        %v354 = vsub.f32 %v352, %v353
        %v355 = vadd.f32 %v354, 1e-05
        %v356 = vrsqrt.pop %v355
        %v357 = vsub.f32 %v341, %v351
        %v358 = vmul.f32 %v357, %v356
        %v359 = vld [vmem:[%s3] sm:$0x1]
        %v361 = vlaneseq
        %v362 = vshrl.u32 %v361, 7
        %v363 = vsub.s32 0, %v362
        %v364 = vrot.slane %v359, %v363
        %v366 = vmul.f32 %v358, %v364
        %v367 = vld [vmem:[%s4] sm:$0x1]
        %v369 = vlaneseq
        %v370 = vshrl.u32 %v369, 7
        %v371 = vsub.s32 0, %v370
        %v372 = vrot.slane %v367, %v371
        %v374 = vadd.f32 %v366, %v372
        %375 = vst [vmem:[%s290] sm:$0xff] %v374
        %s376 = sand.u32 %s162, 1
        %s377 = scalar_lea.sflag [#allocation4], %s376
        %s378 = sand.u32 %s162, 1
        %s379 = smul.addr %s378, 8
        %s380 = scalar_lea.vmem [#allocation8], %s379
        // Predicated region
        $region53: #{tpu_custom_call.1} parent=39 // pred_check
          %p381 = pneg %p172
        $region54: #{tpu_custom_call.1} parent=39 // pred_check_branch
          %383 = sbr.rel (%p381) target = $region56
        $region55: #{tpu_custom_call.1} parent=39 // pred_region
          %s385 = ssub.s32 128, 128
          %386 = vsyncadd %s377, %s385
          %s387 = sadd.s32 %s28, %s27
          %s388 = smul.addr %s387, 128
          %s389 = scalar_lea.hbm %s5, %s388
          %s391 = sshll.u32 %s380, 4
          %s392 = int_to_ptr.vmem [resolvable:$true] %s391
          %394 = dma.vmem_to_hbm [thread:$0]  %s392, 128, %s389, %s377
        $region56: #{tpu_custom_call.1} parent=39 // pred_fallthru
          _
      $region40: #{tpu_custom_call.1} parent=5 // pred_fallthru
        _
      %p395 = scmp.le.s32.totalorder 2, %s18
      // Predicated region
      $region57: #{tpu_custom_call.1} parent=5 // pred_check
        %p396 = pneg %p395
      $region58: #{tpu_custom_call.1} parent=5 // pred_check_branch
        %398 = sbr.rel (%p396) target = $region60
      $region59: #{tpu_custom_call.1} parent=5 // pred_region
        %s399 = ssub.s32 %s18, 2
        // Predicated region
        $region61: #{tpu_custom_call.1} parent=59 // pred_check
          %p400 = pneg %p178
        $region62: #{tpu_custom_call.1} parent=59 // pred_check_branch
          %402 = sbr.rel (%p400) target = $region64
        $region63: #{tpu_custom_call.1} parent=59 // pred_region
          %s403 = sand.u32 %s163, 1
          %s404 = scalar_lea.sflag [#allocation4], %s403
          %s405 = sand.u32 %s163, 1
          %s406 = smul.addr %s405, 8
          %s407 = scalar_lea.vmem [#allocation8], %s406
          %408 = dma.done %s404, 128
        $region64: #{tpu_custom_call.1} parent=59 // pred_fallthru
          _
      $region60: #{tpu_custom_call.1} parent=5 // pred_fallthru
        _
    $region6: #{tpu_custom_call.1} parent=1 // loop_footer
      %s22 = sadd.s32 1, %s18
    $region7: #{tpu_custom_call.1} parent=1 // loop_footer_branch
      %17 = sbr.rel target = $region3
    $region8: #{tpu_custom_call.1} parent=1 // loop_exit
      _
    %409 = vsyncpa [#allocation3], 1
    %s410 = scalar_lea.sflag [#allocation3], 1
    %411 = vsyncpa %s410, 1
    %412 = vsyncpa [#allocation6], 1
    %413 = vsyncpa [#allocation4], 1
    %s414 = scalar_lea.sflag [#allocation4], 1
    %415 = vsyncpa %s414, 1

</llo_original>
